<compile_context>
chip_gen: v7x
topology: tpu7x:2x2x1
jax: 0.10.0
libtpu: 0.0.40
codegen_flags: <defaults>
</compile_context>

<pallas_src>
import math

import jax
import jax.numpy as jnp
from jax.experimental import pallas as pl
from jax.experimental.pallas import tpu as pltpu


_TILE_BYTES = 8 << 20          # per-input-tile budget (8 MiB) -> <=32 MiB VMEM with double buffering
_VMEM_LIMIT = 48 << 20         # fits v7x's 64 MiB physical VMEM; well under v5e/v6e's 128 MiB
_LANE_CANDIDATES = (1024, 512, 256, 128)   # preferred lane-dense widths (multiples of 128)


def _brightness_kernel(factor_ref, x_ref, o_ref):
    """Elementwise brightness hot path.

    factor_ref: SMEM f32[1]  = [factor]
    x_ref, o_ref: VMEM [tile_rows, cols]
    """
    f = factor_ref[0]
    y = x_ref[...].astype(jnp.float32) * f
    # TODO(synk): PIL operates on uint8 pixels (round + clamp); here we keep the float
    # clip(x*f, 0, 1) semantics of the normalized-tensor reference.
    o_ref[...] = jnp.clip(y, 0.0, 1.0).astype(o_ref.dtype)


def _as_2d(x):
    """Copy-free lane-dense 2-D view of x (pure reshape; a bitcast under jit)."""
    total = math.prod(x.shape)
    for cols in _LANE_CANDIDATES:
        if total % cols == 0:
            return x.reshape(total // cols, cols)
    # Fallback: use the full last dim as the lane axis. Block lane dim == full array dim
    # keeps the (8,128) rule satisfied; stores may be masked but nothing is copied/padded.
    cols = x.shape[-1] if x.ndim > 1 else total
    return x.reshape(total // cols, cols)


def _pick_tile_rows(rows, cols, itemsize):
    """Row-tile size: multiple of 8 (or the full row extent) within the VMEM byte budget."""
    if rows <= 8:
        return rows
    budget = max(8, (_TILE_BYTES // max(1, cols * itemsize)) // 8 * 8)
    if rows <= budget:
        # Whole array fits in one tile: still split into >=2 parallel grid steps so v7x's
        # two TensorCores both get work (one extra ~0.35 us step on single-TC chips).
        if rows >= 16:
            half = ((rows + 1) // 2 + 7) // 8 * 8      # round_up(cdiv(rows, 2), 8)
            return min(rows, half)
        return rows
    return budget


@jax.jit
def _apply_brightness(x, factor):
    """out = clip(x * factor, 0, 1), bandwidth-bound streaming kernel."""
    shape = x.shape
    x2d = _as_2d(x)
    rows, cols = x2d.shape
    itemsize = x2d.dtype.itemsize
    tile_rows = _pick_tile_rows(rows, cols, itemsize)
    grid = (pl.cdiv(rows, tile_rows),)

    params = jnp.asarray(factor, dtype=jnp.float32).reshape((1,))
    nbytes = x2d.size * itemsize

    out2d = pl.pallas_call(
        _brightness_kernel,
        out_shape=jax.ShapeDtypeStruct((rows, cols), x2d.dtype),
        grid=grid,
        in_specs=[
            pl.BlockSpec(memory_space=pltpu.MemorySpace.SMEM),            # [factor]
            pl.BlockSpec((tile_rows, cols), lambda i: (i, 0)),            # streamed input tile
        ],
        out_specs=pl.BlockSpec((tile_rows, cols), lambda i: (i, 0)),      # streamed output tile
        compiler_params=pltpu.CompilerParams(
            dimension_semantics=("parallel",),        # v7x: shard the row grid over both TCs
            vmem_limit_bytes=_VMEM_LIMIT,             # allow the 8 MiB tiles on v5e/v6e/v7x
        ),
        cost_estimate=pl.CostEstimate(
            flops=2 * x2d.size, transcendentals=0, bytes_accessed=2 * nbytes),
    )(params, x2d)

    return out2d.reshape(shape)


def brightness_forward(x_nchw, factor):
    """Apply brightness scaling.  x_nchw: float[N, C, H, W].  factor: python/host float."""
    return _apply_brightness(x_nchw, jnp.asarray(factor, dtype=jnp.float32))


class Brightness:
    """JAX/Pallas port of resnet_pytorch.augmentaions.Brightness."""

    def __init__(self, p: float = 0.5, min_factor: float = 0.5, max_factor: float = 1.5,
                 init_key=None):
        self.p = p
        if init_key is None:
            init_key = jax.random.PRNGKey(42)
        # torch.rand(1) * (max - min) + min  — deterministic synthetic init.
        u = jax.random.uniform(init_key, (1,), dtype=jnp.float32)
        self.factor = float(u[0] * (max_factor - min_factor) + min_factor)

    def __call__(self, x_nchw, forward_key):
        # Per-forward Bernoulli draw (torch.rand(1) < p) decided on the host: the p-miss
        # branch returns x untouched and never pays an HBM round trip for a copy kernel.
        # TODO(synk): host-side RNG branch makes __call__ non-jittable, matching the PyTorch
        # module's host-side control flow.
        r = float(jax.random.uniform(forward_key, (), dtype=jnp.float32))
        if r < self.p:
            return brightness_forward(x_nchw, self.factor)
        return x_nchw


if __name__ == "__main__":
    key = jax.random.PRNGKey(0)
    k_x, k_fwd = jax.random.split(key)

    # Small NCHW image batch in [0, 1].
    x = jax.random.uniform(k_x, (2, 4, 16, 16), dtype=jnp.float32)

    module = Brightness(p=0.5, min_factor=0.5, max_factor=1.5)

    # 1) Module forward (stochastic gate decided on host).
    out = module(x, k_fwd)
    out = jax.block_until_ready(out)

    r = float(jax.random.uniform(k_fwd, (), dtype=jnp.float32))
    if r < module.p:
        ref = jnp.clip(x * module.factor, 0.0, 1.0)
    else:
        ref = x
    assert out.shape == x.shape and out.dtype == x.dtype
    assert jnp.allclose(out, ref, atol=1e-6), "module forward mismatch vs reference"

    # 2) Force the "applied" path so the Pallas kernel is exercised regardless of the draw.
    out_applied = jax.block_until_ready(brightness_forward(x, module.factor))
    ref_applied = jnp.clip(x * module.factor, 0.0, 1.0)
    assert jnp.allclose(out_applied, ref_applied, atol=1e-6), "kernel mismatch vs reference"

    print("KERNEL_OK")
</pallas_src>

<mosaic_0001>
module attributes {stable_mosaic.version = 11 : i64} {
  func.func @_brightness_kernel(%arg0: i32, %arg1: memref<1xf32, #tpu.memory_space<smem>>, %arg2: memref<2x1024xf32, #tpu.memory_space<vmem>>, %arg3: memref<2x1024xf32, #tpu.memory_space<vmem>>) attributes {dimension_semantics = [#tpu.dimension_semantics<parallel>], iteration_bounds = array<i64: 1>, scalar_prefetch = 0 : i64, scratch_operands = 0 : i64, tpu.core_type = #tpu.core_type<tc>, window_params = [{transform_indices = @transform_0, window_bounds = array<i64: 1>}, {transform_indices = @transform_1, window_bounds = array<i64: 2, 1024>}, {transform_indices = @transform_2, window_bounds = array<i64: 2, 1024>}]} {
    %c0 = arith.constant 0 : index
    %0 = memref.load %arg1[%c0] : memref<1xf32, #tpu.memory_space<smem>>
    %c0_0 = arith.constant 0 : index
    %c0_1 = arith.constant 0 : index
    %1 = vector.load %arg2[%c0_0, %c0_1] : memref<2x1024xf32, #tpu.memory_space<vmem>>, vector<2x1024xf32>
    %2 = vector.broadcast %0 : f32 to vector<2x1024xf32>
    %3 = arith.mulf %1, %2 : vector<2x1024xf32>
    %cst = arith.constant 0.000000e+00 : f32
    %cst_2 = arith.constant 1.000000e+00 : f32
    %4 = vector.broadcast %cst : f32 to vector<2x1024xf32>
    %5 = arith.maximumf %4, %3 : vector<2x1024xf32>
    %6 = vector.broadcast %cst_2 : f32 to vector<2x1024xf32>
    %7 = arith.minimumf %6, %5 : vector<2x1024xf32>
    %c0_3 = arith.constant 0 : index
    %c0_4 = arith.constant 0 : index
    %8 = vector.load %arg3[%c0_3, %c0_4] : memref<2x1024xf32, #tpu.memory_space<vmem>>, vector<2x1024xf32>
    tpu.vector_store %arg3[%c0_3, %c0_4], %7 {strides = array<i32>} : memref<2x1024xf32, #tpu.memory_space<vmem>>, vector<2x1024xf32>,
    return
  }
  func.func @transform_0(%arg0: i32) -> i32 {
    %c0_i32 = arith.constant 0 : i32
    %c0_i32_0 = arith.constant 0 : i32
    return %c0_i32 : i32
  }
  func.func @transform_1(%arg0: i32) -> (i32, i32) {
    %c0_i32 = arith.constant 0 : i32
    %c0_i32_0 = arith.constant 0 : i32
    return %arg0, %c0_i32 : i32, i32
  }
  func.func @transform_2(%arg0: i32) -> (i32, i32) {
    %c0_i32 = arith.constant 0 : i32
    %c0_i32_0 = arith.constant 0 : i32
    return %arg0, %c0_i32 : i32, i32
  }
}

</mosaic_0001>

<llo_original>
// kernel: _apply_brightness.1
$region0: #{_apply_brightness.1}
  #allocation0 [shape = 'u32[]', space=smem, size = 0x4, offset = 0x4, fixed_abs, tag = 'smem constant byte address 0x4 - core index']
  #allocation1 [shape = 'u32[144,128]{1,0:T(1,128)}', space=vmem, size = 0x12000, scoped, tag = 'internal scratch']
  #allocation2 [shape = 'f32[1]{0:T(128)S(6)}', space=smem, size = 0x200, scoped, tag = 'scoped memory for _apply_brightness.1']
  %s0 = inlined_call_operand.<no memory space> [shape: f32[1], index: 0, kind: input, shape index: {}]
  %s1 = inlined_call_operand.vmem [shape: f32[2,1024], index: 1, kind: input, shape index: {}]
  %s2 = inlined_call_operand.vmem [shape: f32[2,1024], index: 2, kind: output, shape index: {}]
  %s3 = sld [smem:[#allocation0]]
  $region18: #{_apply_brightness.1} parent=0
    _
  %s5 = ssub.s32 1, %s3
  %s6 = scalar_select 0, %s5, %s3
  %7 = sst [smem:[#allocation2]] %s0
  // Predicated region
  $region2: #{_apply_brightness.1} parent=0 // pred_check
    _
  $region3: #{_apply_brightness.1} parent=0 // pred_check_branch
    %9 = sbr.rel (0) target = $region5
  $region4: #{_apply_brightness.1} parent=0 // pred_region
    _
  $region5: #{_apply_brightness.1} parent=0 // pred_fallthru
    _
  // Predicated region
  $region6: #{_apply_brightness.1} parent=0 // pred_check
    _
  $region7: #{_apply_brightness.1} parent=0 // pred_check_branch
    %11 = sbr.rel (0) target = $region9
  $region8: #{_apply_brightness.1} parent=0 // pred_region
    _
  $region9: #{_apply_brightness.1} parent=0 // pred_fallthru
    _
  %s12 = sld [smem:[#allocation2]]
  %v13 = vld [vmem:[%s1] sm:$0xff]
  %v14 = vld [vmem:[%s1 + $0x8] sm:$0xff]
  %v15 = vstv %s12
  %v16 = vmul.f32 %v13, %v15
  %v17 = vmul.f32 %v14, %v15
  %v18 = vmax.f32 %v16, 0.0
  %v19 = vmax.f32 %v17, 0.0
  %v20 = vmin.f32 %v18, 1.0
  %v21 = vmin.f32 %v19, 1.0
  %22 = vst [vmem:[%s2] sm:$0xff] %v20
  %23 = vst [vmem:[%s2 + $0x8] sm:$0xff] %v21
  // Predicated region
  $region10: #{_apply_brightness.1} parent=0 // pred_check
    _
  $region11: #{_apply_brightness.1} parent=0 // pred_check_branch
    %25 = sbr.rel (0) target = $region13
  $region12: #{_apply_brightness.1} parent=0 // pred_region
    _
  $region13: #{_apply_brightness.1} parent=0 // pred_fallthru
    _
  // Predicated region
  $region14: #{_apply_brightness.1} parent=0 // pred_check
    _
  $region15: #{_apply_brightness.1} parent=0 // pred_check_branch
    %27 = sbr.rel (0) target = $region17
  $region16: #{_apply_brightness.1} parent=0 // pred_region
    _
  $region17: #{_apply_brightness.1} parent=0 // pred_fallthru
    _

</llo_original>
